<compile_context>
chip_gen: v7x
topology: tpu7x:2x2x1
jax: 0.10.0
libtpu: 0.0.40
codegen_flags: <defaults>
</compile_context>

<pallas_src>
import jax
import jax.numpy as jnp
from jax.experimental import pallas as pl
from jax.experimental.pallas import tpu as pltpu


def cross_stock_kernel(idx_ref, rel_ref, es_ref, w1_ref, b1_ref, w2_ref,
                       b2_ref, out_ref):
    # idx_ref : SMEM scalar-prefetch, shape (Q,)  -> stock indices
    # rel_ref : (1, S, H)  relationship_matrix[stock_idx[q]]
    # es_ref  : (B, S, H)  encoded states (resident across the grid)
    # w1/b1/w2/b2 : encoder params ([H,H], [1,H], [H,H], [1,H]) (resident)
    # out_ref : (1, B, H)  output slab for query q
    q = pl.program_id(0)
    stock_idx = idx_ref[q]

    rel = rel_ref[0]                                                 # [S, H]

    # encoder: Linear -> ReLU -> Linear, applied to every relationship row.
    h = jnp.dot(rel, w1_ref[...], preferred_element_type=jnp.float32) + b1_ref[...]
    h = jnp.maximum(h, 0.0)
    rel_enc = jnp.dot(h, w2_ref[...], preferred_element_type=jnp.float32) + b2_ref[...]  # [S, H]

    # Mask out i == stock_idx (the python `continue` in the reference loop).
    # (S, 1) iota broadcasts over H inside the where.
    S = rel_enc.shape[0]
    row_ids = jax.lax.broadcasted_iota(jnp.int32, (S, 1), 0)
    rel_enc = jnp.where(row_ids != stock_idx, rel_enc, 0.0)

    # sum_i encoded_states[:, i, :] * rel_enc[i, :]
    es = es_ref[...]                                                 # [B, S, H]
    out_ref[0] = jnp.sum(es * rel_enc[None, :, :], axis=1)           # [B, H]


def cross_stock_relationship_batched(stock_indices, encoded_states, rel_matrix,
                                     w1, b1, w2, b2):
    """Computes the module forward for every index in `stock_indices`.

    Returns an array of shape [Q, B, H] where row q is the module output for
    stock_idx = stock_indices[q].
    """
    B, S, H = encoded_states.shape
    idx = jnp.asarray(stock_indices, dtype=jnp.int32).reshape(-1)
    Q = idx.shape[0]

    # Advisory cost hint: two [S,H]x[H,H] matmuls per query + the B*S*H
    # multiply/accumulate; bytes = rel slabs + es + weights + output.
    flops = Q * (4 * S * H * H + 2 * B * S * H)
    bytes_accessed = 4 * (Q * S * H + B * S * H + 2 * H * H + 2 * H + Q * B * H)
    cost = pl.CostEstimate(flops=flops, transcendentals=0,
                           bytes_accessed=bytes_accessed)

    grid_spec = pltpu.PrefetchScalarGridSpec(
        num_scalar_prefetch=1,
        grid=(Q,),
        in_specs=[
            # relationship_matrix: pick slab [stock_indices[q]] via the
            # prefetched scalar (data-dependent index_map).
            pl.BlockSpec((1, S, H), lambda q, idx_ref: (idx_ref[q], 0, 0)),
            # Constant index_maps => DMA'd once, resident across the grid.
            pl.BlockSpec((B, S, H), lambda q, idx_ref: (0, 0, 0)),
            pl.BlockSpec((H, H),    lambda q, idx_ref: (0, 0)),
            pl.BlockSpec((1, H),    lambda q, idx_ref: (0, 0)),
            pl.BlockSpec((H, H),    lambda q, idx_ref: (0, 0)),
            pl.BlockSpec((1, H),    lambda q, idx_ref: (0, 0)),
        ],
        out_specs=pl.BlockSpec((1, B, H), lambda q, idx_ref: (q, 0, 0)),
    )

    return pl.pallas_call(
        cross_stock_kernel,
        out_shape=jax.ShapeDtypeStruct((Q, B, H), jnp.float32),
        grid_spec=grid_spec,
        compiler_params=pltpu.CompilerParams(
            dimension_semantics=("parallel",)),   # v7x megacore over queries
        cost_estimate=cost,
    )(idx, rel_matrix, encoded_states, w1, b1, w2, b2)


def cross_stock_relationship(stock_idx, encoded_states, rel_matrix, w1, b1, w2, b2):
    """Single-index wrapper matching the PyTorch module signature."""
    out = cross_stock_relationship_batched(
        jnp.asarray([stock_idx], dtype=jnp.int32),
        encoded_states, rel_matrix, w1, b1, w2, b2)
    return out[0]


def reference(stock_idx, encoded_states, rel_matrix, w1, b1, w2, b2):
    # Pure-JAX replica of the PyTorch forward (loop-free equivalent).
    rel = rel_matrix[stock_idx]                                      # [S, H]
    h = jnp.maximum(rel @ w1 + b1, 0.0)
    rel_enc = h @ w2 + b2                                            # [S, H]
    S = rel_matrix.shape[0]
    mask = (jnp.arange(S) != stock_idx)[:, None]
    rel_enc = jnp.where(mask, rel_enc, 0.0)
    return jnp.sum(encoded_states * rel_enc[None, :, :], axis=1)


if __name__ == "__main__":
    B, S, H = 2, 8, 32          # batch, num_stocks, hidden_dim

    key = jax.random.PRNGKey(0)
    k_rel, k_w1, k_b1, k_w2, k_b2, k_es = jax.random.split(key, 6)

    # Deterministic parameter init (xavier-uniform-ish bounds; synthetic).
    bound_rel = (6.0 / (S + S * H)) ** 0.5
    rel_matrix = jax.random.uniform(k_rel, (S, S, H), jnp.float32,
                                    -bound_rel, bound_rel)
    bound_lin = (1.0 / H) ** 0.5
    w1 = jax.random.uniform(k_w1, (H, H), jnp.float32, -bound_lin, bound_lin)
    b1 = jax.random.uniform(k_b1, (1, H), jnp.float32, -bound_lin, bound_lin)
    w2 = jax.random.uniform(k_w2, (H, H), jnp.float32, -bound_lin, bound_lin)
    b2 = jax.random.uniform(k_b2, (1, H), jnp.float32, -bound_lin, bound_lin)

    encoded_states = jax.random.normal(k_es, (B, S, H), jnp.float32)

    # Batched path: all stock indices amortized in a single pallas_call.
    all_idx = jnp.arange(S, dtype=jnp.int32)
    out_all = cross_stock_relationship_batched(all_idx, encoded_states,
                                               rel_matrix, w1, b1, w2, b2)
    out_all = jax.block_until_ready(out_all)

    for q in range(S):
        ref_q = reference(q, encoded_states, rel_matrix, w1, b1, w2, b2)
        if not jnp.allclose(out_all[q], ref_q, atol=1e-4, rtol=1e-4):
            raise AssertionError(
                f"Pallas batched kernel mismatch vs reference at stock_idx={q}")

    # Single-index path matching the original module signature.
    stock_idx = 3
    out_single = cross_stock_relationship(stock_idx, encoded_states,
                                          rel_matrix, w1, b1, w2, b2)
    out_single = jax.block_until_ready(out_single)
    ref_single = reference(stock_idx, encoded_states, rel_matrix, w1, b1, w2, b2)
    if not jnp.allclose(out_single, ref_single, atol=1e-4, rtol=1e-4):
        raise AssertionError("Pallas single-index kernel mismatch vs reference")

    print("KERNEL_OK")
</pallas_src>

<mosaic_0001>
module attributes {stable_mosaic.version = 11 : i64} {
  func.func @cross_stock_kernel(%arg0: i32, %arg1: memref<8xi32, #tpu.memory_space<smem>>, %arg2: memref<1x8x32xf32, #tpu.memory_space<vmem>>, %arg3: memref<2x8x32xf32, #tpu.memory_space<vmem>>, %arg4: memref<32x32xf32, #tpu.memory_space<vmem>>, %arg5: memref<1x32xf32, #tpu.memory_space<vmem>>, %arg6: memref<32x32xf32, #tpu.memory_space<vmem>>, %arg7: memref<1x32xf32, #tpu.memory_space<vmem>>, %arg8: memref<1x2x32xf32, #tpu.memory_space<vmem>>) attributes {dimension_semantics = [#tpu.dimension_semantics<parallel>], iteration_bounds = array<i64: 8>, scalar_prefetch = 1 : i64, scratch_operands = 0 : i64, tpu.core_type = #tpu.core_type<tc>, window_params = [{transform_indices = @transform_0, window_bounds = array<i64: 1, 8, 32>}, {pipeline_mode = #tpu.pipeline_mode<synchronous>, transform_indices = @transform_1, window_bounds = array<i64: 2, 8, 32>}, {pipeline_mode = #tpu.pipeline_mode<synchronous>, transform_indices = @transform_2, window_bounds = array<i64: 32, 32>}, {pipeline_mode = #tpu.pipeline_mode<synchronous>, transform_indices = @transform_3, window_bounds = array<i64: 1, 32>}, {pipeline_mode = #tpu.pipeline_mode<synchronous>, transform_indices = @transform_4, window_bounds = array<i64: 32, 32>}, {pipeline_mode = #tpu.pipeline_mode<synchronous>, transform_indices = @transform_5, window_bounds = array<i64: 1, 32>}, {transform_indices = @transform_6, window_bounds = array<i64: 1, 2, 32>}]} {
    %0 = arith.index_cast %arg0 : i32 to index
    %1 = memref.load %arg1[%0] : memref<8xi32, #tpu.memory_space<smem>>
    %c0 = arith.constant 0 : index
    %c0_0 = arith.constant 0 : index
    %c0_1 = arith.constant 0 : index
    %2 = vector.load %arg2[%c0, %c0_0, %c0_1] : memref<1x8x32xf32, #tpu.memory_space<vmem>>, vector<1x8x32xf32>
    %3 = vector.shape_cast %2 : vector<1x8x32xf32> to vector<8x32xf32>
    %c0_2 = arith.constant 0 : index
    %c0_3 = arith.constant 0 : index
    %4 = vector.load %arg4[%c0_2, %c0_3] : memref<32x32xf32, #tpu.memory_space<vmem>>, vector<32x32xf32>
    %cst = arith.constant dense<0.000000e+00> : vector<8x32xf32>
    %5 = tpu.matmul %3, %4, %cst {dimension_numbers = #tpu.dot_dimension_numbers<[1], [0], [0], [1], [0, 0, 1, 1], [], []>} : vector<8x32xf32>, vector<32x32xf32>, vector<8x32xf32> -> vector<8x32xf32>
    %c0_4 = arith.constant 0 : index
    %c0_5 = arith.constant 0 : index
    %6 = vector.load %arg5[%c0_4, %c0_5] : memref<1x32xf32, #tpu.memory_space<vmem>>, vector<1x32xf32>
    %7 = vector.broadcast %6 : vector<1x32xf32> to vector<8x32xf32>
    %8 = arith.addf %5, %7 : vector<8x32xf32>
    %cst_6 = arith.constant 0.000000e+00 : f32
    %9 = vector.broadcast %cst_6 : f32 to vector<8x32xf32>
    %10 = arith.maximumf %8, %9 : vector<8x32xf32>
    %c0_7 = arith.constant 0 : index
    %c0_8 = arith.constant 0 : index
    %11 = vector.load %arg6[%c0_7, %c0_8] : memref<32x32xf32, #tpu.memory_space<vmem>>, vector<32x32xf32>
    %cst_9 = arith.constant dense<0.000000e+00> : vector<8x32xf32>
    %12 = tpu.matmul %10, %11, %cst_9 {dimension_numbers = #tpu.dot_dimension_numbers<[1], [0], [0], [1], [0, 0, 1, 1], [], []>} : vector<8x32xf32>, vector<32x32xf32>, vector<8x32xf32> -> vector<8x32xf32>
    %c0_10 = arith.constant 0 : index
    %c0_11 = arith.constant 0 : index
    %13 = vector.load %arg7[%c0_10, %c0_11] : memref<1x32xf32, #tpu.memory_space<vmem>>, vector<1x32xf32>
    %14 = vector.broadcast %13 : vector<1x32xf32> to vector<8x32xf32>
    %15 = arith.addf %12, %14 : vector<8x32xf32>
    %16 = tpu.iota {dimensions = array<i32: 0>} : vector<8x1xi32>
    %17 = vector.broadcast %1 : i32 to vector<8x1xi32>
    %18 = arith.cmpi ne, %16, %17 : vector<8x1xi32>
    %cst_12 = arith.constant 0.000000e+00 : f32
    %19 = vector.shape_cast %18 : vector<8x1xi1> to vector<8x1xi1>
    %20 = vector.broadcast %19 : vector<8x1xi1> to vector<8x32xi1>
    %21 = vector.broadcast %cst_12 : f32 to vector<8x32xf32>
    %22 = arith.select %20, %15, %21 : vector<8x32xi1>, vector<8x32xf32>
    %c0_13 = arith.constant 0 : index
    %c0_14 = arith.constant 0 : index
    %c0_15 = arith.constant 0 : index
    %23 = vector.load %arg3[%c0_13, %c0_14, %c0_15] : memref<2x8x32xf32, #tpu.memory_space<vmem>>, vector<2x8x32xf32>
    %24 = vector.shape_cast %22 : vector<8x32xf32> to vector<1x8x32xf32>
    %25 = vector.broadcast %24 : vector<1x8x32xf32> to vector<2x8x32xf32>
    %26 = arith.mulf %23, %25 : vector<2x8x32xf32>
    %cst_16 = arith.constant dense<0.000000e+00> : vector<2x32xf32>
    %27 = vector.multi_reduction <add>, %26, %cst_16 [1] : vector<2x8x32xf32> to vector<2x32xf32>
    %c0_17 = arith.constant 0 : index
    %c0_18 = arith.constant 0 : index
    %c0_19 = arith.constant 0 : index
    %28 = vector.load %arg8[%c0_17, %c0_18, %c0_19] : memref<1x2x32xf32, #tpu.memory_space<vmem>>, vector<1x2x32xf32>
    %29 = vector.shape_cast %28 : vector<1x2x32xf32> to vector<2x32xf32>
    %30 = vector.shape_cast %27 : vector<2x32xf32> to vector<1x2x32xf32>
    tpu.vector_store %arg8[%c0_17, %c0_18, %c0_19], %30 {strides = array<i32>} : memref<1x2x32xf32, #tpu.memory_space<vmem>>, vector<1x2x32xf32>,
    return
  }
  func.func @transform_0(%arg0: i32, %arg1: memref<8xi32, #tpu.memory_space<smem>>) -> (i32, i32, i32) {
    %0 = arith.index_cast %arg0 : i32 to index
    %1 = memref.load %arg1[%0] : memref<8xi32, #tpu.memory_space<smem>>
    %c0_i32 = arith.constant 0 : i32
    %c0_i32_0 = arith.constant 0 : i32
    %c0_i32_1 = arith.constant 0 : i32
    return %1, %c0_i32, %c0_i32_0 : i32, i32, i32
  }
  func.func @transform_1(%arg0: i32, %arg1: memref<8xi32, #tpu.memory_space<smem>>) -> (i32, i32, i32) {
    %c0_i32 = arith.constant 0 : i32
    %c0_i32_0 = arith.constant 0 : i32
    %c0_i32_1 = arith.constant 0 : i32
    %c0_i32_2 = arith.constant 0 : i32
    return %c0_i32, %c0_i32_0, %c0_i32_1 : i32, i32, i32
  }
  func.func @transform_2(%arg0: i32, %arg1: memref<8xi32, #tpu.memory_space<smem>>) -> (i32, i32) {
    %c0_i32 = arith.constant 0 : i32
    %c0_i32_0 = arith.constant 0 : i32
    %c0_i32_1 = arith.constant 0 : i32
    return %c0_i32, %c0_i32_0 : i32, i32
  }
  func.func @transform_3(%arg0: i32, %arg1: memref<8xi32, #tpu.memory_space<smem>>) -> (i32, i32) {
    %c0_i32 = arith.constant 0 : i32
    %c0_i32_0 = arith.constant 0 : i32
    %c0_i32_1 = arith.constant 0 : i32
    return %c0_i32, %c0_i32_0 : i32, i32
  }
  func.func @transform_4(%arg0: i32, %arg1: memref<8xi32, #tpu.memory_space<smem>>) -> (i32, i32) {
    %c0_i32 = arith.constant 0 : i32
    %c0_i32_0 = arith.constant 0 : i32
    %c0_i32_1 = arith.constant 0 : i32
    return %c0_i32, %c0_i32_0 : i32, i32
  }
  func.func @transform_5(%arg0: i32, %arg1: memref<8xi32, #tpu.memory_space<smem>>) -> (i32, i32) {
    %c0_i32 = arith.constant 0 : i32
    %c0_i32_0 = arith.constant 0 : i32
    %c0_i32_1 = arith.constant 0 : i32
    return %c0_i32, %c0_i32_0 : i32, i32
  }
  func.func @transform_6(%arg0: i32, %arg1: memref<8xi32, #tpu.memory_space<smem>>) -> (i32, i32, i32) {
    %c0_i32 = arith.constant 0 : i32
    %c0_i32_0 = arith.constant 0 : i32
    %c0_i32_1 = arith.constant 0 : i32
    return %arg0, %c0_i32, %c0_i32_0 : i32, i32, i32
  }
}

</mosaic_0001>

<llo_original>
// kernel: tpu_custom_call.1
$region0: #{tpu_custom_call.1}
  #allocation0 [shape = 'u32[]', space=smem, size = 0x4, offset = 0x4, fixed_abs, tag = 'smem constant byte address 0x4 - core index']
  #allocation1 [shape = 'u32[144,128]{1,0:T(1,128)}', space=vmem, size = 0x12000, scoped, tag = 'internal scratch']
  #allocation2 [shape = 's32[1]{0}', space=sflag, size = 0x4, scoped, tag = 'scoped memory for tpu_custom_call.1']
  #allocation3 [shape = 'u8[512]{0}', space=smem, size = 0x200, scoped, tag = 'prefetched SMEM operand 0']
  %s0 = inlined_call_operand.hbm [shape: s32[8], index: 0, kind: input, shape index: {}]
  %s1 = inlined_call_operand.hbm [shape: f32[8,8,32], index: 1, kind: input, shape index: {}]
  %s2 = inlined_call_operand.hbm [shape: f32[2,8,32], index: 2, kind: input, shape index: {}]
  %s3 = inlined_call_operand.hbm [shape: f32[32,32], index: 3, kind: input, shape index: {}]
  %s4 = inlined_call_operand.vmem [shape: f32[1,32], index: 4, kind: input, shape index: {}]
  %s5 = inlined_call_operand.hbm [shape: f32[32,32], index: 5, kind: input, shape index: {}]
  %s6 = inlined_call_operand.vmem [shape: f32[1,32], index: 6, kind: input, shape index: {}]
  %s7 = inlined_call_operand.hbm [shape: f32[8,2,32], index: 7, kind: output, shape index: {}]
  %s8 = sld [smem:[#allocation0]]
  $region73: #{tpu_custom_call.1} parent=0
    _
  %s10 = ssub.s32 1, %s8
  %s11 = scalar_select 0, %s10, %s8
  %13 = dma.hbm_to_smem %s0, 16, [#allocation3], [#allocation2]
  %14 = dma.done [#allocation2], 16
  %15 = sfence
  $region1: #{tpu_custom_call.1} parent=0
    #allocation4 [shape = 'u8[8192]{0}', space=vmem, size = 0x2000, scoped, tag = 'input window, operand 1']
    #allocation5 [shape = 's32[2]{0}', space=sflag, size = 0x8, scoped, tag = 'scoped memory for tpu_custom_call.1']
    #allocation6 [shape = 's32[2]{0}', space=sflag, size = 0x8, scoped, tag = 'scoped memory for tpu_custom_call.1']
    #allocation7 [shape = 'u8[8192]{0}', space=vmem, size = 0x2000, scoped, tag = 'input window, operand 2, single buffered']
    #allocation8 [shape = 's32[1]{0}', space=sflag, size = 0x4, scoped, tag = 'scoped memory for tpu_custom_call.1']
    #allocation9 [shape = 'u8[16384]{0}', space=vmem, size = 0x4000, scoped, tag = 'input window, operand 3, single buffered']
    #allocation10 [shape = 'u8[16384]{0}', space=vmem, size = 0x4000, scoped, tag = 'input window, operand 5, single buffered']
    #allocation11 [shape = 's32[1]{0}', space=sflag, size = 0x4, scoped, tag = 'scoped memory for tpu_custom_call.1']
    #allocation12 [shape = 'u8[2048]{0}', space=vmem, size = 0x800, scoped, tag = 'output window, operand 0']
    %16 = vsyncpa [#allocation5], 0
    %s17 = scalar_lea.sflag [#allocation5], 1
    %18 = vsyncpa %s17, 0
    %19 = vsyncpa [#allocation8], 0
    %20 = vsyncpa [#allocation11], 0
    %21 = vsyncpa [#allocation6], 0
    %s22 = scalar_lea.sflag [#allocation6], 1
    %23 = vsyncpa %s22, 0
    loop: start=0, step=1, limit=10
    $region2: #{tpu_custom_call.1} parent=1 // loop_pre_header
      _
    $region3: #{tpu_custom_call.1} parent=1 // loop_header
      %s25 = sphi 0, %s29
      %p26 = scmp.ge.s32.totalorder %s25, 10
      %s37 = sphi 0, %s39
      %s40 = sphi 0, %s37
      %s41 = sphi 0, %s40
      %s57 = sphi 0, %s41
      %s61 = sphi 0, %s61
      %s63 = sphi 0, %s61
      %s64 = sphi 0, %s63
      %s78 = sphi 0, %s64
      %s82 = sphi 0, %s82
      %s84 = sphi 0, %s82
      %s85 = sphi 0, %s84
      %s99 = sphi 0, %s85
      %s103 = sphi 0, %s103
      %s105 = sphi 0, %s103
      %s106 = sphi 0, %s105
      %s120 = sphi 0, %s106
      %s124 = sphi 0, %s124
      %s126 = sphi 0, %s124
      %s127 = sphi 0, %s126
      %s141 = sphi 0, %s127
      %s145 = sphi 0, %s145
      %s147 = sphi 0, %s145
      %s148 = sphi 0, %s147
      %s162 = sphi 0, %s148
      %s168 = sphi 0, %s170
      %s171 = sphi 0, %s168
      %s172 = sphi 0, %s171
      %s188 = sphi 0, %s172
    $region4: #{tpu_custom_call.1} parent=1 // loop_header_branch
      %28 = sbr.rel (%p26) target = $region8
    $region5: #{tpu_custom_call.1} parent=1 // loop_body
      %s30 = ssub.s32 %s25, 1
      %s31 = ssub.s32 %s25, 2
      %s32 = sadd.s32 %s25, 1
      %s33 = sld [smem:[#allocation3 + %s25]]
      %s34 = sld [smem:[#allocation3 + %s32]]
      %s35 = ssub.s32 %s33, %s34
      %p36 = scmp.eq.s32.totalorder %s35, 0
      %s38 = sadd.s32 %s37, 1
      %s39 = scalar_select %p36, %s37, %s38
      %p42 = pneg %p36
      %p43 = scmp.eq.s32.totalorder %s25, 7
      %p44 = por %p42, %p43
      %p45 = scmp.ne.s32.totalorder %s37, %s40
      %p46 = scmp.eq.s32.totalorder %s25, 0
      %p47 = por %p45, %p46
      %p48 = scmp.ne.s32.totalorder %s37, %s40
      %p49 = scmp.eq.s32.totalorder %s30, 7
      %p50 = por %p48, %p49
      %p51 = scmp.ne.s32.totalorder %s40, %s41
      %p52 = scmp.eq.s32.totalorder %s30, 0
      %p53 = por %p51, %p52
      %p54 = scmp.ne.s32.totalorder %s40, %s41
      %p55 = scmp.eq.s32.totalorder %s31, 7
      %p56 = por %p54, %p55
      %p58 = scmp.ne.s32.totalorder %s41, %s57
      %p59 = scmp.eq.s32.totalorder %s31, 0
      %p60 = por %p58, %p59
      %s62 = sadd.s32 %s61, 1
      %p65 = scmp.eq.s32.totalorder %s25, 7
      %p66 = scmp.ne.s32.totalorder %s61, %s63
      %p67 = scmp.eq.s32.totalorder %s25, 0
      %p68 = por %p66, %p67
      %p69 = scmp.ne.s32.totalorder %s61, %s63
      %p70 = scmp.eq.s32.totalorder %s30, 7
      %p71 = por %p69, %p70
      %p72 = scmp.ne.s32.totalorder %s63, %s64
      %p73 = scmp.eq.s32.totalorder %s30, 0
      %p74 = por %p72, %p73
      %p75 = scmp.ne.s32.totalorder %s63, %s64
      %p76 = scmp.eq.s32.totalorder %s31, 7
      %p77 = por %p75, %p76
      %p79 = scmp.ne.s32.totalorder %s64, %s78
      %p80 = scmp.eq.s32.totalorder %s31, 0
      %p81 = por %p79, %p80
      %s83 = sadd.s32 %s82, 1
      %p86 = scmp.eq.s32.totalorder %s25, 7
      %p87 = scmp.ne.s32.totalorder %s82, %s84
      %p88 = scmp.eq.s32.totalorder %s25, 0
      %p89 = por %p87, %p88
      %p90 = scmp.ne.s32.totalorder %s82, %s84
      %p91 = scmp.eq.s32.totalorder %s30, 7
      %p92 = por %p90, %p91
      %p93 = scmp.ne.s32.totalorder %s84, %s85
      %p94 = scmp.eq.s32.totalorder %s30, 0
      %p95 = por %p93, %p94
      %p96 = scmp.ne.s32.totalorder %s84, %s85
      %p97 = scmp.eq.s32.totalorder %s31, 7
      %p98 = por %p96, %p97
      %p100 = scmp.ne.s32.totalorder %s85, %s99
      %p101 = scmp.eq.s32.totalorder %s31, 0
      %p102 = por %p100, %p101
      %s104 = sadd.s32 %s103, 1
      %p107 = scmp.eq.s32.totalorder %s25, 7
      %p108 = scmp.ne.s32.totalorder %s103, %s105
      %p109 = scmp.eq.s32.totalorder %s25, 0
      %p110 = por %p108, %p109
      %p111 = scmp.ne.s32.totalorder %s103, %s105
      %p112 = scmp.eq.s32.totalorder %s30, 7
      %p113 = por %p111, %p112
      %p114 = scmp.ne.s32.totalorder %s105, %s106
      %p115 = scmp.eq.s32.totalorder %s30, 0
      %p116 = por %p114, %p115
      %p117 = scmp.ne.s32.totalorder %s105, %s106
      %p118 = scmp.eq.s32.totalorder %s31, 7
      %p119 = por %p117, %p118
      %p121 = scmp.ne.s32.totalorder %s106, %s120
      %p122 = scmp.eq.s32.totalorder %s31, 0
      %p123 = por %p121, %p122
      %s125 = sadd.s32 %s124, 1
      %p128 = scmp.eq.s32.totalorder %s25, 7
      %p129 = scmp.ne.s32.totalorder %s124, %s126
      %p130 = scmp.eq.s32.totalorder %s25, 0
      %p131 = por %p129, %p130
      %p132 = scmp.ne.s32.totalorder %s124, %s126
      %p133 = scmp.eq.s32.totalorder %s30, 7
      %p134 = por %p132, %p133
      %p135 = scmp.ne.s32.totalorder %s126, %s127
      %p136 = scmp.eq.s32.totalorder %s30, 0
      %p137 = por %p135, %p136
      %p138 = scmp.ne.s32.totalorder %s126, %s127
      %p139 = scmp.eq.s32.totalorder %s31, 7
      %p140 = por %p138, %p139
      %p142 = scmp.ne.s32.totalorder %s127, %s141
      %p143 = scmp.eq.s32.totalorder %s31, 0
      %p144 = por %p142, %p143
      %s146 = sadd.s32 %s145, 1
      %p149 = scmp.eq.s32.totalorder %s25, 7
      %p150 = scmp.ne.s32.totalorder %s145, %s147
      %p151 = scmp.eq.s32.totalorder %s25, 0
      %p152 = por %p150, %p151
      %p153 = scmp.ne.s32.totalorder %s145, %s147
      %p154 = scmp.eq.s32.totalorder %s30, 7
      %p155 = por %p153, %p154
      %p156 = scmp.ne.s32.totalorder %s147, %s148
      %p157 = scmp.eq.s32.totalorder %s30, 0
      %p158 = por %p156, %p157
      %p159 = scmp.ne.s32.totalorder %s147, %s148
      %p160 = scmp.eq.s32.totalorder %s31, 7
      %p161 = por %p159, %p160
      %p163 = scmp.ne.s32.totalorder %s148, %s162
      %p164 = scmp.eq.s32.totalorder %s31, 0
      %p165 = por %p163, %p164
      %s166 = ssub.s32 %s25, %s32
      %p167 = scmp.eq.s32.totalorder %s166, 0
      %s169 = sadd.s32 %s168, 1
      %s170 = scalar_select %p167, %s168, %s169
      %p173 = pneg %p167
      %p174 = scmp.eq.s32.totalorder %s25, 7
      %p175 = por %p173, %p174
      %p176 = scmp.ne.s32.totalorder %s168, %s171
      %p177 = scmp.eq.s32.totalorder %s25, 0
      %p178 = por %p176, %p177
      %p179 = scmp.ne.s32.totalorder %s168, %s171
      %p180 = scmp.eq.s32.totalorder %s30, 7
      %p181 = por %p179, %p180
      %p182 = scmp.ne.s32.totalorder %s171, %s172
      %p183 = scmp.eq.s32.totalorder %s30, 0
      %p184 = por %p182, %p183
      %p185 = scmp.ne.s32.totalorder %s171, %s172
      %p186 = scmp.eq.s32.totalorder %s31, 7
      %p187 = por %p185, %p186
      %p189 = scmp.ne.s32.totalorder %s172, %s188
      %p190 = scmp.eq.s32.totalorder %s31, 0
      %p191 = por %p189, %p190
      %p192 = scmp.le.s32.totalorder 1, %s25
      %p193 = scmp.lt.s32.totalorder %s25, 9
      %p194 = pnand %p192, %p193
      %p195 = pneg %p194
      // Predicated region
      $region9: #{tpu_custom_call.1} parent=5 // pred_check
        _
      $region10: #{tpu_custom_call.1} parent=5 // pred_check_branch
        %197 = sbr.rel (%p194) target = $region12
      $region11: #{tpu_custom_call.1} parent=5 // pred_region
        %s198 = ssub.s32 %s25, 1
        // Predicated region
        $region13: #{tpu_custom_call.1} parent=11 // pred_check
          %p199 = pneg %p74
        $region14: #{tpu_custom_call.1} parent=11 // pred_check_branch
          %201 = sbr.rel (%p199) target = $region16
        $region15: #{tpu_custom_call.1} parent=11 // pred_region
          %s203 = ssub.s32 256, 256
          %204 = vsyncadd [#allocation8], %s203
          %s205 = sshll.u32 [#allocation7], 4
          %s206 = int_to_ptr.vmem [resolvable:$true] %s205
          %211 = dma.hbm_to_vmem [thread:$0]  %s2, 256, %s206, [#allocation8], 128, 128, 8
        $region16: #{tpu_custom_call.1} parent=11 // pred_fallthru
          _
        // Predicated region
        $region17: #{tpu_custom_call.1} parent=11 // pred_check
          %p212 = pneg %p95
        $region18: #{tpu_custom_call.1} parent=11 // pred_check_branch
          %214 = sbr.rel (%p212) target = $region20
        $region19: #{tpu_custom_call.1} parent=11 // pred_region
          %s216 = ssub.s32 512, 512
          %217 = vsyncadd [#allocation8], %s216
          %s218 = sshll.u32 [#allocation9], 4
          %s219 = int_to_ptr.vmem [resolvable:$true] %s218
          %224 = dma.hbm_to_vmem [thread:$0]  %s3, 512, %s219, [#allocation8], 128, 128, 8
        $region20: #{tpu_custom_call.1} parent=11 // pred_fallthru
          _
        // Predicated region
        $region21: #{tpu_custom_call.1} parent=11 // pred_check
          %p225 = pneg %p116
        $region22: #{tpu_custom_call.1} parent=11 // pred_check_branch
          %227 = sbr.rel (%p225) target = $region24
        $region23: #{tpu_custom_call.1} parent=11 // pred_region
          _
        $region24: #{tpu_custom_call.1} parent=11 // pred_fallthru
          _
        // Predicated region
        $region25: #{tpu_custom_call.1} parent=11 // pred_check
          %p228 = pneg %p137
        $region26: #{tpu_custom_call.1} parent=11 // pred_check_branch
          %230 = sbr.rel (%p228) target = $region28
        $region27: #{tpu_custom_call.1} parent=11 // pred_region
          %s232 = ssub.s32 512, 512
          %233 = vsyncadd [#allocation11], %s232
          %s234 = sshll.u32 [#allocation10], 4
          %s235 = int_to_ptr.vmem [resolvable:$true] %s234
          %240 = dma.hbm_to_vmem [thread:$0]  %s5, 512, %s235, [#allocation11], 128, 128, 8
        $region28: #{tpu_custom_call.1} parent=11 // pred_fallthru
          _
        // Predicated region
        $region29: #{tpu_custom_call.1} parent=11 // pred_check
          %p241 = pneg %p158
        $region30: #{tpu_custom_call.1} parent=11 // pred_check_branch
          %243 = sbr.rel (%p241) target = $region32
        $region31: #{tpu_custom_call.1} parent=11 // pred_region
          _
        $region32: #{tpu_custom_call.1} parent=11 // pred_fallthru
          _
      $region12: #{tpu_custom_call.1} parent=5 // pred_fallthru
        _
      %p244 = scmp.lt.s32.totalorder %s25, 8
      // Predicated region
      $region33: #{tpu_custom_call.1} parent=5 // pred_check
        %p245 = pneg %p244
      $region34: #{tpu_custom_call.1} parent=5 // pred_check_branch
        %247 = sbr.rel (%p245) target = $region36
      $region35: #{tpu_custom_call.1} parent=5 // pred_region
        // Predicated region
        $region37: #{tpu_custom_call.1} parent=35 // pred_check
          %p248 = pneg %p47
        $region38: #{tpu_custom_call.1} parent=35 // pred_check_branch
          %250 = sbr.rel (%p248) target = $region40
        $region39: #{tpu_custom_call.1} parent=35 // pred_region
          %s251 = sand.u32 %s37, 1
          %s252 = scalar_lea.sflag [#allocation5], %s251
          %s253 = sand.u32 %s37, 1
          %s254 = smul.addr %s253, 8
          %s255 = scalar_lea.vmem [#allocation4], %s254
          %s256 = sld [smem:[#allocation3 + %s25]]
          %s258 = ssub.s32 128, 128
          %259 = vsyncadd %s252, %s258
          %s260 = smul.addr %s256, 128
          %s261 = scalar_lea.hbm %s1, %s260
          %s263 = sshll.u32 %s255, 4
          %s264 = int_to_ptr.vmem [resolvable:$true] %s263
          %266 = dma.hbm_to_vmem [thread:$0]  %s261, 128, %s264, %s252
        $region40: #{tpu_custom_call.1} parent=35 // pred_fallthru
          _
      $region36: #{tpu_custom_call.1} parent=5 // pred_fallthru
        _
      %p267 = scmp.le.s32.totalorder 1, %s25
      %p268 = scmp.lt.s32.totalorder %s25, 9
      %p269 = pnand %p267, %p268
      %p270 = pneg %p269
      // Predicated region
      $region41: #{tpu_custom_call.1} parent=5 // pred_check
        _
      $region42: #{tpu_custom_call.1} parent=5 // pred_check_branch
        %272 = sbr.rel (%p269) target = $region44
      $region43: #{tpu_custom_call.1} parent=5 // pred_region
        %s273 = ssub.s32 %s25, 1
        %s274 = sand.u32 %s40, 1
        %s275 = scalar_lea.sflag [#allocation5], %s274
        %s276 = sand.u32 %s40, 1
        %s277 = smul.addr %s276, 8
        %s278 = scalar_lea.vmem [#allocation4], %s277
        // Predicated region
        $region45: #{tpu_custom_call.1} parent=43 // pred_check
          %p279 = pneg %p53
        $region46: #{tpu_custom_call.1} parent=43 // pred_check_branch
          %281 = sbr.rel (%p279) target = $region48
        $region47: #{tpu_custom_call.1} parent=43 // pred_region
          %282 = dma.done %s275, 128
        $region48: #{tpu_custom_call.1} parent=43 // pred_fallthru
          _
        // Predicated region
        $region49: #{tpu_custom_call.1} parent=43 // pred_check
          %p283 = pneg %p74
        $region50: #{tpu_custom_call.1} parent=43 // pred_check_branch
          %285 = sbr.rel (%p283) target = $region52
        $region51: #{tpu_custom_call.1} parent=43 // pred_region
          %286 = dma.done [#allocation8], 256
        $region52: #{tpu_custom_call.1} parent=43 // pred_fallthru
          _
        // Predicated region
        $region53: #{tpu_custom_call.1} parent=43 // pred_check
          %p287 = pneg %p95
        $region54: #{tpu_custom_call.1} parent=43 // pred_check_branch
          %289 = sbr.rel (%p287) target = $region56
        $region55: #{tpu_custom_call.1} parent=43 // pred_region
          %290 = dma.done [#allocation8], 512
        $region56: #{tpu_custom_call.1} parent=43 // pred_fallthru
          _
        // Predicated region
        $region57: #{tpu_custom_call.1} parent=43 // pred_check
          %p291 = pneg %p137
        $region58: #{tpu_custom_call.1} parent=43 // pred_check_branch
          %293 = sbr.rel (%p291) target = $region60
        $region59: #{tpu_custom_call.1} parent=43 // pred_region
          %294 = dma.done [#allocation11], 512
        $region60: #{tpu_custom_call.1} parent=43 // pred_fallthru
          _
        %s295 = sand.u32 %s40, 1
        %s296 = scalar_lea.sflag [#allocation5], %s295
        %s297 = sand.u32 %s40, 1
        %s298 = smul.addr %s297, 8
        %s299 = scalar_lea.vmem [#allocation4], %s298
        %p300 = pneg %p53
        %p301 = pneg %p50
        %p302 = pneg %p74
        %p303 = pneg %p71
        %p304 = pneg %p95
        %p305 = pneg %p92
        %p306 = pneg %p116
        %p307 = pneg %p113
        %p308 = pneg %p137
        %p309 = pneg %p134
        %p310 = pneg %p158
        %p311 = pneg %p155
        %p312 = pneg %p184
        %p313 = pneg %p181
        %s314 = sand.u32 %s171, 1
        %s315 = scalar_lea.sflag [#allocation6], %s314
        %s316 = sand.u32 %s171, 1
        %s317 = smul.addr %s316, 2
        %s318 = scalar_lea.vmem [#allocation12], %s317
        %s319 = sld [smem:[#allocation3 + %s30]]
        %s320 = sld [smem:[#allocation3 + %s30]]
        %v321 = vld [vmem:[%s278] sm:$0xff]
        %v322 = vld [vmem:[#allocation9] sm:$0xff]
        %v323 = vld [vmem:[#allocation9 + $0x8] sm:$0xff]
        %v324 = vld [vmem:[#allocation9 + $0x10] sm:$0xff]
        %v325 = vld [vmem:[#allocation9 + $0x18] sm:$0xff]
        %v326 = vld [vmem:[%s4] sm:$0x1]
        %v328 = vlaneseq
        %v329 = vshrl.u32 %v328, 7
        %v330 = vsub.s32 0, %v329
        %v331 = vrot.slane %v326, %v330
        %vm333 = vcmask 261120
        %v335 = vsel %vm333, %v321, 0
        %337 = vmatprep.subr.mxu0 0.0
        %338 = vmatpush1.msra.mxu0 %v322
        %339 = vmatprep.subr.mxu0 0.0
        %340 = vmatpush1.msra.mxu0 %v323
        %341 = vmatprep.subr.mxu0 0.0
        %342 = vmatpush1.msra.mxu0 %v324
        %343 = vmatprep.subr.mxu0 0.0
        %344 = vmatpush1.msra.mxu0 %v325
        %345 = vmatprep.subr.mxu0 0.0
        %346 = vmatpush1.msra.mxu0 0.0
        %347 = vmatprep.subr.mxu0 0.0
        %348 = vmatpush1.msra.mxu0 0.0
        %349 = vmatprep.subr.mxu0 0.0
        %350 = vmatpush1.msra.mxu0 0.0
        %351 = vmatprep.subr.mxu0 0.0
        %352 = vmatpush1.msra.mxu0 0.0
        %353 = vmatprep.subr.mxu0 0.0
        %354 = vmatpush1.msra.mxu0 0.0
        %355 = vmatprep.subr.mxu0 0.0
        %356 = vmatpush1.msra.mxu0 0.0
        %357 = vmatprep.subr.mxu0 0.0
        %358 = vmatpush1.msra.mxu0 0.0
        %359 = vmatprep.subr.mxu0 0.0
        %360 = vmatpush1.msra.mxu0 0.0
        %361 = vmatprep.subr.mxu0 0.0
        %362 = vmatpush1.msra.mxu0 0.0
        %363 = vmatprep.subr.mxu0 0.0
        %364 = vmatpush1.msra.mxu0 0.0
        %365 = vmatprep.subr.mxu0 0.0
        %366 = vmatpush1.msra.mxu0 0.0
        %367 = vmatprep.subr.mxu0 0.0
        %368 = vmatpush1.msra.mxu0 0.0
        %369 = vmatprep.subr.mxu0 0.0
        %370 = vmatpush1.msra.mxu0 0.0
        %371 = vmatprep.subr.mxu0 0.0
        %372 = vmatpush1.msra.mxu0 0.0
        %373 = vmatprep.subr.mxu0 0.0
        %374 = vmatpush1.msra.mxu0 0.0
        %375 = vmatprep.subr.mxu0 0.0
        %376 = vmatpush1.msra.mxu0 0.0
        %377 = vmatprep.subr.mxu0 0.0
        %378 = vmatpush1.msra.mxu0 0.0
        %379 = vmatprep.subr.mxu0 0.0
        %380 = vmatpush1.msra.mxu0 0.0
        %381 = vmatprep.subr.mxu0 0.0
        %382 = vmatpush1.msra.mxu0 0.0
        %383 = vmatprep.subr.mxu0 0.0
        %384 = vmatpush1.msra.mxu0 0.0
        %385 = vmatprep.subr.mxu0 0.0
        %386 = vmatpush1.msra.mxu0 0.0
        %387 = vmatprep.subr.mxu0 0.0
        %388 = vmatpush1.msra.mxu0 0.0
        %389 = vmatprep.subr.mxu0 0.0
        %390 = vmatpush1.msra.mxu0 0.0
        %391 = vmatprep.subr.mxu0 0.0
        %392 = vmatpush1.msra.mxu0 0.0
        %393 = vmatprep.subr.mxu0 0.0
        %394 = vmatpush1.msra.mxu0 0.0
        %395 = vmatprep.subr.mxu0 0.0
        %396 = vmatpush1.msra.mxu0 0.0
        %397 = vmatprep.subr.mxu0 0.0
        %398 = vmatpush1.msra.mxu0 0.0
        %399 = vmatprep.subr.mxu0 0.0
        %400 = vmatpush1.msra.mxu0 0.0
        %401 = vmatprep.mubr.f32.mxu0 0.0
        %402 = vmatmul.mubr.f32.gmra.mrb[0].mxu0 %v335
        %v403 = vpop.f32.mrb[0].mxu0
        %v404 = vadd.f32 %v331, %v403
        %v405 = vpop.f32.mrb[0].mxu0
        %406 = vdwg.mxu0
        %v407 = vmax.f32 %v404, 0.0
        %v408 = vld [vmem:[#allocation10] sm:$0xff]
        %v409 = vld [vmem:[#allocation10 + $0x8] sm:$0xff]
        %v410 = vld [vmem:[#allocation10 + $0x10] sm:$0xff]
        %v411 = vld [vmem:[#allocation10 + $0x18] sm:$0xff]
        %v412 = vld [vmem:[%s6] sm:$0x1]
        %v414 = vlaneseq
        %v415 = vshrl.u32 %v414, 7
        %v416 = vsub.s32 0, %v415
        %v417 = vrot.slane %v412, %v416
        %v420 = vsel %vm333, %v407, 0
        %422 = vmatprep.subr.mxu0 0.0
        %423 = vmatpush1.msra.mxu0 %v408
        %424 = vmatprep.subr.mxu0 0.0
        %425 = vmatpush1.msra.mxu0 %v409
        %426 = vmatprep.subr.mxu0 0.0
        %427 = vmatpush1.msra.mxu0 %v410
        %428 = vmatprep.subr.mxu0 0.0
        %429 = vmatpush1.msra.mxu0 %v411
        %430 = vmatprep.subr.mxu0 0.0
        %431 = vmatpush1.msra.mxu0 0.0
        %432 = vmatprep.subr.mxu0 0.0
        %433 = vmatpush1.msra.mxu0 0.0
        %434 = vmatprep.subr.mxu0 0.0
        %435 = vmatpush1.msra.mxu0 0.0
        %436 = vmatprep.subr.mxu0 0.0
        %437 = vmatpush1.msra.mxu0 0.0
        %438 = vmatprep.subr.mxu0 0.0
        %439 = vmatpush1.msra.mxu0 0.0
        %440 = vmatprep.subr.mxu0 0.0
        %441 = vmatpush1.msra.mxu0 0.0
        %442 = vmatprep.subr.mxu0 0.0
        %443 = vmatpush1.msra.mxu0 0.0
        %444 = vmatprep.subr.mxu0 0.0
        %445 = vmatpush1.msra.mxu0 0.0
        %446 = vmatprep.subr.mxu0 0.0
        %447 = vmatpush1.msra.mxu0 0.0
        %448 = vmatprep.subr.mxu0 0.0
        %449 = vmatpush1.msra.mxu0 0.0
        %450 = vmatprep.subr.mxu0 0.0
        %451 = vmatpush1.msra.mxu0 0.0
        %452 = vmatprep.subr.mxu0 0.0
        %453 = vmatpush1.msra.mxu0 0.0
        %454 = vmatprep.subr.mxu0 0.0
        %455 = vmatpush1.msra.mxu0 0.0
        %456 = vmatprep.subr.mxu0 0.0
        %457 = vmatpush1.msra.mxu0 0.0
        %458 = vmatprep.subr.mxu0 0.0
        %459 = vmatpush1.msra.mxu0 0.0
        %460 = vmatprep.subr.mxu0 0.0
        %461 = vmatpush1.msra.mxu0 0.0
        %462 = vmatprep.subr.mxu0 0.0
        %463 = vmatpush1.msra.mxu0 0.0
        %464 = vmatprep.subr.mxu0 0.0
        %465 = vmatpush1.msra.mxu0 0.0
        %466 = vmatprep.subr.mxu0 0.0
        %467 = vmatpush1.msra.mxu0 0.0
        %468 = vmatprep.subr.mxu0 0.0
        %469 = vmatpush1.msra.mxu0 0.0
        %470 = vmatprep.subr.mxu0 0.0
        %471 = vmatpush1.msra.mxu0 0.0
        %472 = vmatprep.subr.mxu0 0.0
        %473 = vmatpush1.msra.mxu0 0.0
        %474 = vmatprep.subr.mxu0 0.0
        %475 = vmatpush1.msra.mxu0 0.0
        %476 = vmatprep.subr.mxu0 0.0
        %477 = vmatpush1.msra.mxu0 0.0
        %478 = vmatprep.subr.mxu0 0.0
        %479 = vmatpush1.msra.mxu0 0.0
        %480 = vmatprep.subr.mxu0 0.0
        %481 = vmatpush1.msra.mxu0 0.0
        %482 = vmatprep.subr.mxu0 0.0
        %483 = vmatpush1.msra.mxu0 0.0
        %484 = vmatprep.subr.mxu0 0.0
        %485 = vmatpush1.msra.mxu0 0.0
        %486 = vmatprep.mubr.f32.mxu0 0.0
        %487 = vmatmul.mubr.f32.gmra.mrb[0].mxu0 %v420
        %v488 = vpop.f32.mrb[0].mxu0
        %v489 = vadd.f32 %v417, %v488
        %v490 = vpop.f32.mrb[0].mxu0
        %491 = vdwg.mxu0
        %v492 = vlaneseq
        %v493 = vshrl.u32 %v492, 7
        %v494 = vstv %s320
        %vm495 = vcmp.ne.s32.totalorder %v493, %v494
        %v496 = vsel %vm495, 1, 0
        %vm497 = vcmp.eq.s32.totalorder %v496, 1
        %v498 = vsel %vm497, %v489, 0.0
        %v499 = vld [vmem:[#allocation7] sm:$0xff]
        %v500 = vld [vmem:[#allocation7 + $0x8] sm:$0xff]
        %v501 = vmul.f32 %v499, %v498
        %v502 = vmul.f32 %v500, %v498
        %v503 = vsel %vm333, %v501, 0.0
        %v504 = vrot.slane %v503, 4
        %v505 = vadd.f32 %v503, %v504
        %v506 = vrot.slane %v505, 2
        %v507 = vadd.f32 %v505, %v506
        %v508 = vrot.slane %v507, 1
        %v509 = vadd.f32 %v507, %v508
        %v510 = vsel %vm333, %v502, 0.0
        %v511 = vrot.slane %v510, 4
        %v512 = vadd.f32 %v510, %v511
        %v513 = vrot.slane %v512, 2
        %v514 = vadd.f32 %v512, %v513
        %v515 = vrot.slane %v514, 1
        %v516 = vadd.f32 %v514, %v515
        %vm519 = vcmask 1041409
        %v520 = vsel %vm519, %v516, %v509
        %vm522 = vcmask 254976
        %523 = vst.msk [vmem:[%s318] sm:$0x3] %vm522, %v520
        %s524 = sand.u32 %s171, 1
        %s525 = scalar_lea.sflag [#allocation6], %s524
        %s526 = sand.u32 %s171, 1
        %s527 = smul.addr %s526, 2
        %s528 = scalar_lea.vmem [#allocation12], %s527
        // Predicated region
        $region61: #{tpu_custom_call.1} parent=43 // pred_check
          %p529 = pneg %p181
        $region62: #{tpu_custom_call.1} parent=43 // pred_check_branch
          %531 = sbr.rel (%p529) target = $region64
        $region63: #{tpu_custom_call.1} parent=43 // pred_region
          %s533 = ssub.s32 32, 32
          %534 = vsyncadd %s525, %s533
          %s535 = smul.addr %s30, 32
          %s536 = scalar_lea.hbm %s7, %s535
          %s538 = sshll.u32 %s528, 4
          %s539 = int_to_ptr.vmem [resolvable:$true] %s538
          %541 = dma.vmem_to_hbm [thread:$0]  %s539, 32, %s536, %s525
        $region64: #{tpu_custom_call.1} parent=43 // pred_fallthru
          _
      $region44: #{tpu_custom_call.1} parent=5 // pred_fallthru
        _
      %p542 = scmp.le.s32.totalorder 2, %s25
      // Predicated region
      $region65: #{tpu_custom_call.1} parent=5 // pred_check
        %p543 = pneg %p542
      $region66: #{tpu_custom_call.1} parent=5 // pred_check_branch
        %545 = sbr.rel (%p543) target = $region68
      $region67: #{tpu_custom_call.1} parent=5 // pred_region
        %s546 = ssub.s32 %s25, 2
        // Predicated region
        $region69: #{tpu_custom_call.1} parent=67 // pred_check
          %p547 = pneg %p187
        $region70: #{tpu_custom_call.1} parent=67 // pred_check_branch
          %549 = sbr.rel (%p547) target = $region72
        $region71: #{tpu_custom_call.1} parent=67 // pred_region
          %s550 = sand.u32 %s172, 1
          %s551 = scalar_lea.sflag [#allocation6], %s550
          %s552 = sand.u32 %s172, 1
          %s553 = smul.addr %s552, 2
          %s554 = scalar_lea.vmem [#allocation12], %s553
          %555 = dma.done %s551, 32
        $region72: #{tpu_custom_call.1} parent=67 // pred_fallthru
          _
      $region68: #{tpu_custom_call.1} parent=5 // pred_fallthru
        _
    $region6: #{tpu_custom_call.1} parent=1 // loop_footer
      %s29 = sadd.s32 1, %s25
    $region7: #{tpu_custom_call.1} parent=1 // loop_footer_branch
      %24 = sbr.rel target = $region3
    $region8: #{tpu_custom_call.1} parent=1 // loop_exit
      _
    %556 = vsyncpa [#allocation5], 1
    %s557 = scalar_lea.sflag [#allocation5], 1
    %558 = vsyncpa %s557, 1
    %559 = vsyncpa [#allocation8], 1
    %560 = vsyncpa [#allocation11], 1
    %561 = vsyncpa [#allocation6], 1
    %s562 = scalar_lea.sflag [#allocation6], 1
    %563 = vsyncpa %s562, 1

</llo_original>
